<compile_context>
chip_gen: v5e
topology: v5e:2x2
jax: 0.10.0
libtpu: 0.0.40
codegen_flags: <defaults>
</compile_context>

<pallas_src>
import jax
import jax.numpy as jnp
from jax.experimental import pallas as pl
from jax.experimental.pallas import tpu as pltpu


def _round_up(x, m):
    return ((x + m - 1) // m) * m


def _linear_kernel(x_ref, w_ref, b_ref, o_ref):
    # x_ref: (TM, D)   w_ref: (C_pad, D)   b_ref: (1, C_pad)   o_ref: (TM, C_pad)
    # Contract last dim of x with last dim of w (i.e. x @ w.T) on the MXU,
    # accumulate in f32, add bias on the VPU.
    acc = jax.lax.dot_general(
        x_ref[...], w_ref[...],
        dimension_numbers=(((1,), (1,)), ((), ())),
        preferred_element_type=jnp.float32,
    )
    o_ref[...] = (acc + b_ref[...]).astype(o_ref.dtype)


def prepare_params(weight, bias):
    """Pad nn.Linear params once (hoisted out of the per-call path).

    weight: (C, D) float32 (PyTorch layout), bias: (C,) float32
    returns (w_pad (C_pad, D), bias2d (1, C_pad), num_classes C)
    """
    C, D = weight.shape
    C_pad = _round_up(C, 128)  # lane-dense output columns -> unmasked vst
    if C_pad != C:
        weight = jnp.pad(weight, ((0, C_pad - C), (0, 0)))
        bias = jnp.pad(bias, ((0, C_pad - C),))
    return weight, bias.reshape(1, C_pad), C


def _resident_spec(shape):
    # Constant-index (VMEM-resident) operand: request a single buffer instead of
    # the default double-buffering. Fall back gracefully if unsupported.
    try:
        return pl.BlockSpec(shape, lambda i: (0, 0), pipeline_mode=pl.Buffered(1))
    except Exception:
        return pl.BlockSpec(shape, lambda i: (0, 0))


def logistic_regression_forward(x, w_pad, bias2d, num_classes, *, tm=None):
    """Forward pass of LogisticRegressionTorch: y = x @ weight.T + bias.

    x:       (B, D) float32
    w_pad:   (C_pad, D) float32  (class-dim pre-padded to a multiple of 128)
    bias2d:  (1, C_pad) float32
    returns  (B, num_classes) float32
    """
    B, D = x.shape
    C_pad = w_pad.shape[0]
    itemsize = 4  # f32

    # ---- VMEM budget (per generation) -------------------------------------
    weight_bytes = C_pad * D * itemsize
    bias_bytes = 8 * C_pad * itemsize  # (1, C_pad) rounds up to 8 sublanes
    try:
        info = pltpu.get_tpu_info()
        vmem_physical = int(getattr(info, "vmem_capacity_bytes", 64 * 1024 * 1024))
    except Exception:
        vmem_physical = 64 * 1024 * 1024  # conservative (v7x per-TC)
    vmem_cap = max(32 * 1024 * 1024, int(0.75 * vmem_physical))

    # ---- Batch tile: fill remaining budget with double-buffered x/out tiles
    if tm is None:
        tile_budget = vmem_cap - weight_bytes - bias_bytes - 4 * 1024 * 1024
        per_row = 2 * (D + C_pad) * itemsize  # 2 bufs each of x-tile and out-tile rows
        tm = (max(tile_budget, 0) // max(per_row, 1)) // 8 * 8
        tm = min(max(tm, 8), 4096)
    TM = max(8, (tm // 8) * 8)
    # Ensure >= 2 grid steps when possible (v7x megacore) and never exceed batch.
    TM = min(TM, _round_up(pl.cdiv(B, 2), 8), _round_up(B, 8))
    grid = pl.cdiv(B, TM)

    # ---- Derived VMEM limit and cost hint ----------------------------------
    tiles_bytes = 2 * TM * (D + C_pad) * itemsize
    vmem_limit = int(min(vmem_cap, weight_bytes + bias_bytes + tiles_bytes
                         + 8 * 1024 * 1024))
    cost = pl.CostEstimate(
        flops=2 * B * D * C_pad,
        bytes_accessed=(B * D + C_pad * D + C_pad + B * C_pad) * itemsize,
        transcendentals=0,
    )

    out = pl.pallas_call(
        _linear_kernel,
        out_shape=jax.ShapeDtypeStruct((B, C_pad), x.dtype),
        grid_spec=pl.GridSpec(
            grid=(grid,),
            in_specs=[
                # x: one (TM, D) tile per grid step (double-buffered by Pallas).
                pl.BlockSpec((TM, D), lambda i: (i, 0)),
                # weight / bias: constant index_map, single-buffered VMEM residents.
                _resident_spec((C_pad, D)),
                _resident_spec((1, C_pad)),
            ],
            out_specs=pl.BlockSpec((TM, C_pad), lambda i: (i, 0)),
        ),
        compiler_params=pltpu.CompilerParams(
            dimension_semantics=("parallel",),
            vmem_limit_bytes=vmem_limit,
        ),
        cost_estimate=cost,
    )(x, w_pad, bias2d)

    if C_pad != num_classes:
        # Lazy view of the valid classes; fuse a downstream epilogue (softmax/loss)
        # into the kernel to eliminate even this pass when it matters.
        out = out[:, :num_classes]
    return out


if __name__ == "__main__":
    key = jax.random.PRNGKey(0)
    kx, kw, kb = jax.random.split(key, 3)

    batch = 24        # not a multiple of the batch tile -> exercises the ragged tile
    input_dim = 32
    num_classes = 10  # not a multiple of 128 -> exercises class-dim padding

    x = jax.random.normal(kx, (batch, input_dim), dtype=jnp.float32)
    # Deterministic parameter init (mimics nn.Linear uniform(-1/sqrt(D), 1/sqrt(D)))
    bound = 1.0 / (float(input_dim) ** 0.5)
    weight = jax.random.uniform(kw, (num_classes, input_dim),
                                minval=-bound, maxval=bound, dtype=jnp.float32)
    bias = jax.random.uniform(kb, (num_classes,),
                              minval=-bound, maxval=bound, dtype=jnp.float32)

    # Pad params once (hoisted out of the per-call path), then run the forward.
    w_pad, b2, n_cls = prepare_params(weight, bias)
    out = logistic_regression_forward(x, w_pad, b2, n_cls)
    out = jax.block_until_ready(out)

    # Reference check in plain JAX (module forward is the affine layer only;
    # nn.Linear applies no activation).
    ref = x @ weight.T + bias
    assert out.shape == (batch, num_classes)
    assert jnp.allclose(out, ref, atol=1e-5, rtol=1e-5)

    print("KERNEL_OK")
</pallas_src>

<mosaic_0001>
module attributes {stable_mosaic.version = 11 : i64} {
  func.func @_linear_kernel(%arg0: i32, %arg1: memref<16x32xf32, #tpu.memory_space<vmem>>, %arg2: memref<128x32xf32, #tpu.memory_space<vmem>>, %arg3: memref<1x128xf32, #tpu.memory_space<vmem>>, %arg4: memref<16x128xf32, #tpu.memory_space<vmem>>) attributes {dimension_semantics = [#tpu.dimension_semantics<parallel>], iteration_bounds = array<i64: 2>, scalar_prefetch = 0 : i64, scratch_operands = 0 : i64, tpu.core_type = #tpu.core_type<tc>, window_params = [{transform_indices = @transform_0, window_bounds = array<i64: 16, 32>}, {pipeline_mode = #tpu.pipeline_mode<synchronous>, transform_indices = @transform_1, window_bounds = array<i64: 128, 32>}, {pipeline_mode = #tpu.pipeline_mode<synchronous>, transform_indices = @transform_2, window_bounds = array<i64: 1, 128>}, {transform_indices = @transform_3, window_bounds = array<i64: 16, 128>}]} {
    %c0 = arith.constant 0 : index
    %c0_0 = arith.constant 0 : index
    %0 = vector.load %arg1[%c0, %c0_0] : memref<16x32xf32, #tpu.memory_space<vmem>>, vector<16x32xf32>
    %c0_1 = arith.constant 0 : index
    %c0_2 = arith.constant 0 : index
    %1 = vector.load %arg2[%c0_1, %c0_2] : memref<128x32xf32, #tpu.memory_space<vmem>>, vector<128x32xf32>
    %cst = arith.constant dense<0.000000e+00> : vector<16x128xf32>
    %2 = tpu.matmul %0, %1, %cst {dimension_numbers = #tpu.dot_dimension_numbers<[1], [1], [0], [0], [0, 0, 1, 0], [], []>} : vector<16x32xf32>, vector<128x32xf32>, vector<16x128xf32> -> vector<16x128xf32>
    %c0_3 = arith.constant 0 : index
    %c0_4 = arith.constant 0 : index
    %3 = vector.load %arg3[%c0_3, %c0_4] : memref<1x128xf32, #tpu.memory_space<vmem>>, vector<1x128xf32>
    %4 = vector.broadcast %3 : vector<1x128xf32> to vector<16x128xf32>
    %5 = arith.addf %2, %4 : vector<16x128xf32>
    %c0_5 = arith.constant 0 : index
    %c0_6 = arith.constant 0 : index
    %6 = vector.load %arg4[%c0_5, %c0_6] : memref<16x128xf32, #tpu.memory_space<vmem>>, vector<16x128xf32>
    tpu.vector_store %arg4[%c0_5, %c0_6], %5 {strides = array<i32>} : memref<16x128xf32, #tpu.memory_space<vmem>>, vector<16x128xf32>,
    return
  }
  func.func @transform_0(%arg0: i32) -> (i32, i32) {
    %c0_i32 = arith.constant 0 : i32
    %c0_i32_0 = arith.constant 0 : i32
    return %arg0, %c0_i32 : i32, i32
  }
  func.func @transform_1(%arg0: i32) -> (i32, i32) {
    %c0_i32 = arith.constant 0 : i32
    %c0_i32_0 = arith.constant 0 : i32
    %c0_i32_1 = arith.constant 0 : i32
    return %c0_i32, %c0_i32_0 : i32, i32
  }
  func.func @transform_2(%arg0: i32) -> (i32, i32) {
    %c0_i32 = arith.constant 0 : i32
    %c0_i32_0 = arith.constant 0 : i32
    %c0_i32_1 = arith.constant 0 : i32
    return %c0_i32, %c0_i32_0 : i32, i32
  }
  func.func @transform_3(%arg0: i32) -> (i32, i32) {
    %c0_i32 = arith.constant 0 : i32
    %c0_i32_0 = arith.constant 0 : i32
    return %arg0, %c0_i32 : i32, i32
  }
}

</mosaic_0001>

<llo_original>
// kernel: tpu_custom_call.1
$region0: #{tpu_custom_call.1}
  #allocation0 [shape = 'u32[]', space=smem, size = 0x4, offset = 0x4, fixed_abs, tag = 'smem constant byte address 0x4 - core index']
  #allocation1 [shape = 'u32[72,128]{1,0:T(1,128)}', space=vmem, size = 0x9000, scoped, tag = 'internal scratch']
  %s0 = inlined_call_operand.vmem [shape: f32[24,32], index: 0, kind: input, shape index: {}]
  %s1 = inlined_call_operand.vmem [shape: f32[128,32], index: 1, kind: input, shape index: {}]
  %s2 = inlined_call_operand.vmem [shape: f32[1,128], index: 2, kind: input, shape index: {}]
  %s3 = inlined_call_operand.hbm [shape: f32[24,128], index: 3, kind: output, shape index: {}]
  %s4 = sld [smem:[#allocation0]]
  $region45: #{tpu_custom_call.1} parent=0
    _
  %s6 = ssub.s32 1, %s4
  %s7 = scalar_select 0, %s6, %s4
  $region1: #{tpu_custom_call.1} parent=0
    #allocation2 [shape = 'u8[16384]{0}', space=vmem, size = 0x4000, scoped, tag = 'output window, operand 0']
    #allocation3 [shape = 's32[2]{0}', space=sflag, size = 0x8, scoped, tag = 'scoped memory for tpu_custom_call.1']
    %8 = vsyncpa [#allocation3], 0
    %s9 = scalar_lea.sflag [#allocation3], 1
    %10 = vsyncpa %s9, 0
    loop: start=0, step=1, limit=4
    $region2: #{tpu_custom_call.1} parent=1 // loop_pre_header
      _
    $region3: #{tpu_custom_call.1} parent=1 // loop_header
      %s12 = sphi 0, %s16
      %p13 = scmp.ge.s32.totalorder %s12, 4
      %s22 = sphi 0, %s24
      %s25 = sphi 0, %s22
      %s26 = sphi 0, %s25
      %s42 = sphi 0, %s26
      %s46 = sphi 0, %s46
      %s48 = sphi 0, %s46
      %s49 = sphi 0, %s48
      %s63 = sphi 0, %s49
      %s67 = sphi 0, %s67
      %s69 = sphi 0, %s67
      %s70 = sphi 0, %s69
      %s84 = sphi 0, %s70
      %s90 = sphi 0, %s92
      %s93 = sphi 0, %s90
      %s94 = sphi 0, %s93
      %s110 = sphi 0, %s94
    $region4: #{tpu_custom_call.1} parent=1 // loop_header_branch
      %15 = sbr.rel (%p13) target = $region8
    $region5: #{tpu_custom_call.1} parent=1 // loop_body
      %s17 = ssub.s32 %s12, 1
      %s18 = ssub.s32 %s12, 2
      %s19 = sadd.s32 %s12, 1
      %s20 = ssub.s32 %s12, %s19
      %p21 = scmp.eq.s32.totalorder %s20, 0
      %s23 = sadd.s32 %s22, 1
      %s24 = scalar_select %p21, %s22, %s23
      %p27 = pneg %p21
      %p28 = scmp.eq.s32.totalorder %s12, 1
      %p29 = por %p27, %p28
      %p30 = scmp.ne.s32.totalorder %s22, %s25
      %p31 = scmp.eq.s32.totalorder %s12, 0
      %p32 = por %p30, %p31
      %p33 = scmp.ne.s32.totalorder %s22, %s25
      %p34 = scmp.eq.s32.totalorder %s17, 1
      %p35 = por %p33, %p34
      %p36 = scmp.ne.s32.totalorder %s25, %s26
      %p37 = scmp.eq.s32.totalorder %s17, 0
      %p38 = por %p36, %p37
      %p39 = scmp.ne.s32.totalorder %s25, %s26
      %p40 = scmp.eq.s32.totalorder %s18, 1
      %p41 = por %p39, %p40
      %p43 = scmp.ne.s32.totalorder %s26, %s42
      %p44 = scmp.eq.s32.totalorder %s18, 0
      %p45 = por %p43, %p44
      %s47 = sadd.s32 %s46, 1
      %p50 = scmp.eq.s32.totalorder %s12, 1
      %p51 = scmp.ne.s32.totalorder %s46, %s48
      %p52 = scmp.eq.s32.totalorder %s12, 0
      %p53 = por %p51, %p52
      %p54 = scmp.ne.s32.totalorder %s46, %s48
      %p55 = scmp.eq.s32.totalorder %s17, 1
      %p56 = por %p54, %p55
      %p57 = scmp.ne.s32.totalorder %s48, %s49
      %p58 = scmp.eq.s32.totalorder %s17, 0
      %p59 = por %p57, %p58
      %p60 = scmp.ne.s32.totalorder %s48, %s49
      %p61 = scmp.eq.s32.totalorder %s18, 1
      %p62 = por %p60, %p61
      %p64 = scmp.ne.s32.totalorder %s49, %s63
      %p65 = scmp.eq.s32.totalorder %s18, 0
      %p66 = por %p64, %p65
      %s68 = sadd.s32 %s67, 1
      %p71 = scmp.eq.s32.totalorder %s12, 1
      %p72 = scmp.ne.s32.totalorder %s67, %s69
      %p73 = scmp.eq.s32.totalorder %s12, 0
      %p74 = por %p72, %p73
      %p75 = scmp.ne.s32.totalorder %s67, %s69
      %p76 = scmp.eq.s32.totalorder %s17, 1
      %p77 = por %p75, %p76
      %p78 = scmp.ne.s32.totalorder %s69, %s70
      %p79 = scmp.eq.s32.totalorder %s17, 0
      %p80 = por %p78, %p79
      %p81 = scmp.ne.s32.totalorder %s69, %s70
      %p82 = scmp.eq.s32.totalorder %s18, 1
      %p83 = por %p81, %p82
      %p85 = scmp.ne.s32.totalorder %s70, %s84
      %p86 = scmp.eq.s32.totalorder %s18, 0
      %p87 = por %p85, %p86
      %s88 = ssub.s32 %s12, %s19
      %p89 = scmp.eq.s32.totalorder %s88, 0
      %s91 = sadd.s32 %s90, 1
      %s92 = scalar_select %p89, %s90, %s91
      %p95 = pneg %p89
      %p96 = scmp.eq.s32.totalorder %s12, 1
      %p97 = por %p95, %p96
      %p98 = scmp.ne.s32.totalorder %s90, %s93
      %p99 = scmp.eq.s32.totalorder %s12, 0
      %p100 = por %p98, %p99
      %p101 = scmp.ne.s32.totalorder %s90, %s93
      %p102 = scmp.eq.s32.totalorder %s17, 1
      %p103 = por %p101, %p102
      %p104 = scmp.ne.s32.totalorder %s93, %s94
      %p105 = scmp.eq.s32.totalorder %s17, 0
      %p106 = por %p104, %p105
      %p107 = scmp.ne.s32.totalorder %s93, %s94
      %p108 = scmp.eq.s32.totalorder %s18, 1
      %p109 = por %p107, %p108
      %p111 = scmp.ne.s32.totalorder %s94, %s110
      %p112 = scmp.eq.s32.totalorder %s18, 0
      %p113 = por %p111, %p112
      %p114 = scmp.le.s32.totalorder 1, %s12
      %p115 = scmp.lt.s32.totalorder %s12, 3
      %p116 = pnand %p114, %p115
      %p117 = pneg %p116
      // Predicated region
      $region9: #{tpu_custom_call.1} parent=5 // pred_check
        _
      $region10: #{tpu_custom_call.1} parent=5 // pred_check_branch
        %119 = sbr.rel (%p116) target = $region12
      $region11: #{tpu_custom_call.1} parent=5 // pred_region
        %s120 = ssub.s32 %s12, 1
        // Predicated region
        $region13: #{tpu_custom_call.1} parent=11 // pred_check
          %p121 = pneg %p59
        $region14: #{tpu_custom_call.1} parent=11 // pred_check_branch
          %123 = sbr.rel (%p121) target = $region16
        $region15: #{tpu_custom_call.1} parent=11 // pred_region
          _
        $region16: #{tpu_custom_call.1} parent=11 // pred_fallthru
          _
        // Predicated region
        $region17: #{tpu_custom_call.1} parent=11 // pred_check
          %p124 = pneg %p80
        $region18: #{tpu_custom_call.1} parent=11 // pred_check_branch
          %126 = sbr.rel (%p124) target = $region20
        $region19: #{tpu_custom_call.1} parent=11 // pred_region
          _
        $region20: #{tpu_custom_call.1} parent=11 // pred_fallthru
          _
      $region12: #{tpu_custom_call.1} parent=5 // pred_fallthru
        _
      %p127 = scmp.lt.s32.totalorder %s12, 2
      // Predicated region
      $region21: #{tpu_custom_call.1} parent=5 // pred_check
        %p128 = pneg %p127
      $region22: #{tpu_custom_call.1} parent=5 // pred_check_branch
        %130 = sbr.rel (%p128) target = $region24
      $region23: #{tpu_custom_call.1} parent=5 // pred_region
        // Predicated region
        $region25: #{tpu_custom_call.1} parent=23 // pred_check
          %p131 = pneg %p32
        $region26: #{tpu_custom_call.1} parent=23 // pred_check_branch
          %133 = sbr.rel (%p131) target = $region28
        $region27: #{tpu_custom_call.1} parent=23 // pred_region
          %s134 = smul.u32 2, %s12
          %s135 = ssub.s32 3, %s134
          %p136 = scmp.lt.s32.totalorder %s135, 2
          %s137 = scalar_select %p136, %s135, 2
          %s138 = smul.u32 8, %s137
          %p139 = scmp.lt.s32.totalorder %s134, 2
          %s140 = scalar_select %p139, %s134, 2
          %s141 = smul.addr %s140, 8
          %s142 = scalar_lea.vmem %s0, %s141
          %s143 = smul.u32 2, %s12
          %s144 = ssub.s32 3, %s143
          %p145 = scmp.lt.s32.totalorder %s144, 2
          %s146 = scalar_select %p145, %s144, 2
          %s147 = smul.u32 8, %s146
        $region28: #{tpu_custom_call.1} parent=23 // pred_fallthru
          _
      $region24: #{tpu_custom_call.1} parent=5 // pred_fallthru
        _
      %p148 = scmp.le.s32.totalorder 1, %s12
      %p149 = scmp.lt.s32.totalorder %s12, 3
      %p150 = pnand %p148, %p149
      %p151 = pneg %p150
      // Predicated region
      $region29: #{tpu_custom_call.1} parent=5 // pred_check
        _
      $region30: #{tpu_custom_call.1} parent=5 // pred_check_branch
        %153 = sbr.rel (%p150) target = $region32
      $region31: #{tpu_custom_call.1} parent=5 // pred_region
        %s154 = ssub.s32 %s12, 1
        %s155 = smul.u32 2, %s17
        %s156 = ssub.s32 3, %s155
        %p157 = scmp.lt.s32.totalorder %s156, 2
        %s158 = scalar_select %p157, %s156, 2
        %s159 = smul.u32 8, %s158
        %p160 = scmp.lt.s32.totalorder %s155, 2
        %s161 = scalar_select %p160, %s155, 2
        %s162 = smul.addr %s161, 8
        %s163 = scalar_lea.vmem %s0, %s162
        %p164 = pneg %p38
        %p165 = pneg %p35
        %p166 = pneg %p59
        %p167 = pneg %p56
        %p168 = pneg %p80
        %p169 = pneg %p77
        %p170 = pneg %p106
        %p171 = pneg %p103
        %s172 = sand.u32 %s93, 1
        %s173 = scalar_lea.sflag [#allocation3], %s172
        %s174 = sand.u32 %s93, 1
        %s175 = smul.addr %s174, 16
        %s176 = scalar_lea.vmem [#allocation2], %s175
        %s177 = smul.u32 2, %s17
        %s178 = ssub.s32 3, %s177
        %p179 = scmp.lt.s32.totalorder %s178, 2
        %s180 = scalar_select %p179, %s178, 2
        %s181 = smul.u32 8, %s180
        %p182 = scmp.lt.s32.totalorder %s177, 2
        %s183 = scalar_select %p182, %s177, 2
        %s184 = smul.addr %s183, 8
        %s185 = scalar_lea.vmem %s0, %s184
        %s186 = smul.u32 2, %s17
        %s187 = ssub.s32 3, %s186
        %p188 = scmp.lt.s32.totalorder %s187, 2
        %s189 = scalar_select %p188, %s187, 2
        %s190 = smul.u32 8, %s189
        %s191 = smul.u32 2, %s17
        %s192 = ssub.s32 3, %s191
        %p193 = scmp.lt.s32.totalorder %s192, 2
        %s194 = scalar_select %p193, %s192, 2
        %s195 = smul.u32 8, %s194
        %v196 = vld [vmem:[%s185] sm:$0xff]
        %v197 = vld [vmem:[%s185 + $0x8] sm:$0xff]
        %v198 = vld [vmem:[%s1] sm:$0xff]
        %v199 = vld [vmem:[%s1 + $0x8] sm:$0xff]
        %v200 = vld [vmem:[%s1 + $0x10] sm:$0xff]
        %v201 = vld [vmem:[%s1 + $0x18] sm:$0xff]
        %v202 = vld [vmem:[%s1 + $0x20] sm:$0xff]
        %v203 = vld [vmem:[%s1 + $0x28] sm:$0xff]
        %v204 = vld [vmem:[%s1 + $0x30] sm:$0xff]
        %v205 = vld [vmem:[%s1 + $0x38] sm:$0xff]
        %v206 = vld [vmem:[%s1 + $0x40] sm:$0xff]
        %v207 = vld [vmem:[%s1 + $0x48] sm:$0xff]
        %v208 = vld [vmem:[%s1 + $0x50] sm:$0xff]
        %v209 = vld [vmem:[%s1 + $0x58] sm:$0xff]
        %v210 = vld [vmem:[%s1 + $0x60] sm:$0xff]
        %v211 = vld [vmem:[%s1 + $0x68] sm:$0xff]
        %v212 = vld [vmem:[%s1 + $0x70] sm:$0xff]
        %v213 = vld [vmem:[%s1 + $0x78] sm:$0xff]
        %v214 = vld [vmem:[%s2] sm:$0x1]
        %v216 = vperm.slane %v214, 0
        %vm218 = vcmask 261120
        %v220 = vsel %vm218, %v196, 0
        %v223 = vsel %vm218, %v197, 0
        %v226 = vsel %vm218, %v198, 0
        %v229 = vsel %vm218, %v199, 0
        %v232 = vsel %vm218, %v200, 0
        %v235 = vsel %vm218, %v201, 0
        %v238 = vsel %vm218, %v202, 0
        %v241 = vsel %vm218, %v203, 0
        %v244 = vsel %vm218, %v204, 0
        %v247 = vsel %vm218, %v205, 0
        %v250 = vsel %vm218, %v206, 0
        %v253 = vsel %vm218, %v207, 0
        %v256 = vsel %vm218, %v208, 0
        %v259 = vsel %vm218, %v209, 0
        %v262 = vsel %vm218, %v210, 0
        %v265 = vsel %vm218, %v211, 0
        %v268 = vsel %vm218, %v212, 0
        %v271 = vsel %vm218, %v213, 0
        %273 = vmatpush.xpose.msra.mxu0 %v271
        %274 = vmatpush.xpose.msra.mxu0 %v268
        %275 = vmatpush.xpose.msra.mxu0 %v265
        %276 = vmatpush.xpose.msra.mxu0 %v262
        %277 = vmatpush.xpose.msra.mxu0 %v259
        %278 = vmatpush.xpose.msra.mxu0 %v256
        %279 = vmatpush.xpose.msra.mxu0 %v253
        %280 = vmatpush.xpose.msra.mxu0 %v250
        %281 = vmatpush.xpose.msra.mxu0 %v247
        %282 = vmatpush.xpose.msra.mxu0 %v244
        %283 = vmatpush.xpose.msra.mxu0 %v241
        %284 = vmatpush.xpose.msra.mxu0 %v238
        %285 = vmatpush.xpose.msra.mxu0 %v235
        %286 = vmatpush.xpose.msra.mxu0 %v232
        %287 = vmatpush.xpose.msra.mxu0 %v229
        %288 = vmatpush.xpose.msra.mxu0 %v226
        %289 = vmatmul.f32.gmra.mxu0 %v220
        %v290 = vpop.f32.mrf.mxu0
        %v291 = vadd.f32 %v216, %v290
        %292 = vmatmul.f32.gmra.mxu0 %v223
        %v293 = vpop.f32.mrf.mxu0
        %v294 = vadd.f32 %v216, %v293
        %295 = vdwg.mxu0
        %296 = vst [vmem:[%s176] sm:$0xff] %v291
        %297 = vst [vmem:[%s176 + $0x8] sm:$0xff] %v294
        %s298 = sand.u32 %s93, 1
        %s299 = scalar_lea.sflag [#allocation3], %s298
        %s300 = sand.u32 %s93, 1
        %s301 = smul.addr %s300, 16
        %s302 = scalar_lea.vmem [#allocation2], %s301
        // Predicated region
        $region33: #{tpu_custom_call.1} parent=31 // pred_check
          %p303 = pneg %p103
        $region34: #{tpu_custom_call.1} parent=31 // pred_check_branch
          %305 = sbr.rel (%p303) target = $region36
        $region35: #{tpu_custom_call.1} parent=31 // pred_region
          %s306 = smul.u32 2, %s17
          %s307 = ssub.s32 3, %s306
          %p308 = scmp.lt.s32.totalorder %s307, 2
          %s309 = scalar_select %p308, %s307, 2
          %s310 = smul.u32 8, %s309
          %s311 = ssub.s32 16, %s310
          %s312 = sshll.u32 %s311, 4
          %313 = vsyncadd %s299, %s312
          %p314 = scmp.ne.s32.totalorder 0, %s310
          %s315 = smul.addr %s306, 8
          %s316 = scalar_lea.hbm %s3, %s315
          %s317 = smul.u32 8, %s309
          %s318 = sshll.u32 %s302, 4
          %s319 = int_to_ptr.vmem [resolvable:$true] %s318
          %s320 = sshll.u32 %s316, 4
          %s321 = int_to_ptr.hbm [resolvable:$true] %s320
          %s322 = sshll.u32 %s317, 4
          %326 = dma.vmem_to_hbm [thread:$0]  (%p314), %s319, %s322, %s321, %s299, 128, 128, 8
        $region36: #{tpu_custom_call.1} parent=31 // pred_fallthru
          _
      $region32: #{tpu_custom_call.1} parent=5 // pred_fallthru
        _
      %p327 = scmp.le.s32.totalorder 2, %s12
      // Predicated region
      $region37: #{tpu_custom_call.1} parent=5 // pred_check
        %p328 = pneg %p327
      $region38: #{tpu_custom_call.1} parent=5 // pred_check_branch
        %330 = sbr.rel (%p328) target = $region40
      $region39: #{tpu_custom_call.1} parent=5 // pred_region
        %s331 = ssub.s32 %s12, 2
        // Predicated region
        $region41: #{tpu_custom_call.1} parent=39 // pred_check
          %p332 = pneg %p109
        $region42: #{tpu_custom_call.1} parent=39 // pred_check_branch
          %334 = sbr.rel (%p332) target = $region44
        $region43: #{tpu_custom_call.1} parent=39 // pred_region
          %s335 = sand.u32 %s94, 1
          %s336 = scalar_lea.sflag [#allocation3], %s335
          %s337 = sand.u32 %s94, 1
          %s338 = smul.addr %s337, 16
          %s339 = scalar_lea.vmem [#allocation2], %s338
          %341 = dma.done %s336, 256
        $region44: #{tpu_custom_call.1} parent=39 // pred_fallthru
          _
      $region40: #{tpu_custom_call.1} parent=5 // pred_fallthru
        _
    $region6: #{tpu_custom_call.1} parent=1 // loop_footer
      %s16 = sadd.s32 1, %s12
    $region7: #{tpu_custom_call.1} parent=1 // loop_footer_branch
      %11 = sbr.rel target = $region3
    $region8: #{tpu_custom_call.1} parent=1 // loop_exit
      _
    %342 = vsyncpa [#allocation3], 1
    %s343 = scalar_lea.sflag [#allocation3], 1
    %344 = vsyncpa %s343, 1

</llo_original>
